<compile_context>
chip_gen: v5e
topology: v5e:2x2
jax: 0.10.0
libtpu: 0.0.40
codegen_flags: <defaults>
</compile_context>

<pallas_src>
import functools

import jax
import jax.numpy as jnp
import numpy as np
from jax.experimental import pallas as pl
from jax.experimental.pallas import tpu as pltpu


def _round_up(n, m):
    return ((n + m - 1) // m) * m


def _device_kind():
    try:
        return jax.devices()[0].device_kind.lower()
    except Exception:
        return ""


def discriminator_kernel(x_ref, w1_ref, b1_ref, w2_ref, b2_ref, w3_ref, b3_ref,
                         o_ref, *, use_mxu_tail):
    # Fused MLP hot path for one batch tile: 2 (or 3) MXU matmuls in bf16 with
    # f32 accumulation + VPU activations, all resident in VMEM.
    cdt = w1_ref.dtype                       # MXU compute dtype (bf16)
    x = x_ref[...].astype(cdt)

    h1 = jnp.dot(x, w1_ref[...], preferred_element_type=jnp.float32)
    h1 = h1 + b1_ref[...]                    # (TB,128) + (1,128) broadcast
    h1 = jnp.maximum(h1, 0.2 * h1)           # LeakyReLU(0.2), exact

    h2 = jnp.dot(h1.astype(cdt), w2_ref[...], preferred_element_type=jnp.float32)
    h2 = h2 + b2_ref[...]                    # (TB,64) + (1,64)
    h2 = jnp.maximum(h2, 0.2 * h2)

    if use_mxu_tail:
        # Linear(64 -> 1) on the MXU (it has huge slack next to the two tiny
        # matmuls); w3_ref is (64, 1).
        h3 = jnp.dot(h2.astype(cdt), w3_ref[...],
                     preferred_element_type=jnp.float32) + b3_ref[...]
    else:
        # v5e: VPU multiply + XLU lane reduction; w3_ref is (1, 64).
        h3 = jnp.sum(h2 * w3_ref[...].astype(jnp.float32),
                     axis=-1, keepdims=True) + b3_ref[...]

    o_ref[...] = jax.nn.sigmoid(h3).astype(o_ref.dtype)


def discriminator_forward(x, params, *, block_b=None, compute_dtype=jnp.bfloat16):
    """x: (B, input_dim), f32 or bf16. params: dict of (w1,b1,w2,b2,w3,b3)."""
    B, D = x.shape
    kind = _device_kind()
    is_v7x = "v7" in kind
    is_v5e = ("v5e" in kind) or ("v5 lite" in kind) or ("v5litepod" in kind)

    cdt = np.dtype(compute_dtype)
    x_bytes = np.dtype(x.dtype).itemsize

    # Weights are fetched once (constant index_map -> VMEM-resident), so their
    # HBM dtype is bandwidth-irrelevant; cast them to the MXU-native bf16 so
    # both matmul operands are bf16. Biases stay f32 for the accumulator add.
    w1 = params["w1"].astype(cdt)
    w2 = params["w2"].astype(cdt)
    b1 = params["b1"].astype(jnp.float32)
    b2 = params["b2"].astype(jnp.float32)
    b3 = jnp.reshape(params["b3"], (1, 1)).astype(jnp.float32)

    use_mxu_tail = not is_v5e
    w3_flat = jnp.reshape(params["w3"], (-1,))
    if use_mxu_tail:
        w3 = jnp.reshape(w3_flat, (w3_flat.shape[0], 1)).astype(cdt)      # (64, 1)
    else:
        w3 = jnp.reshape(w3_flat, (1, w3_flat.shape[0])).astype(jnp.float32)  # (1, 64)

    h1d, h2d = w1.shape[1], w2.shape[1]

    # --- VMEM-budget-derived batch tile -------------------------------------
    # Per-row footprint: double-buffered x tile + f32 h1/h2 (+ bf16 copies fed
    # to the MXU) + double-buffered (TB,1) output. 1.5x safety for temporaries.
    per_row = 1.5 * (2 * D * x_bytes
                     + h1d * (4 + cdt.itemsize)
                     + h2d * (4 + cdt.itemsize)
                     + 2 * 4)
    vmem_budget = (24 << 20) if is_v7x else (48 << 20)
    row_align = 16  # bf16 sublane packing (also a multiple of the f32 8)

    if block_b is None:
        block_b = max(row_align, (int(vmem_budget // per_row) // row_align) * row_align)
        block_b = min(block_b, 8192)                      # diminishing returns past here
        block_b = min(block_b, _round_up(B, row_align))   # never pad a small batch up
        if B >= 2 * row_align:
            # Keep >=2 grid steps so the parallel batch axis can shard across
            # both v7x TensorCores (near-free on single-TC v5e/v6e).
            block_b = min(block_b, _round_up(pl.cdiv(B, 2), row_align))
        block_b = _round_up(block_b, row_align)
    else:
        block_b = _round_up(block_b, row_align)

    b_pad = _round_up(B, block_b)
    if b_pad != B:
        x = jnp.pad(x, ((0, b_pad - B), (0, 0)))
    num_tiles = b_pad // block_b
    grid = (num_tiles,)

    # --- VMEM limit sized from the actual working set -----------------------
    weight_bytes = sum(int(a.size) * a.dtype.itemsize
                       for a in (w1, b1, w2, b2, w3, b3))
    need = int(block_b * per_row) + 2 * weight_bytes + (4 << 20)
    vmem_cap = (56 << 20) if is_v7x else (100 << 20)
    vmem_limit = int(min(vmem_cap, max(vmem_budget, need)))

    # --- Specs ---------------------------------------------------------------
    # x streamed per tile; extra buffering on v5e when the tile is moderate and
    # the grid deep enough for depth-3 to pay off.
    x_spec_kwargs = {}
    if is_v5e and block_b <= 2048 and num_tiles >= 4:
        x_spec_kwargs["pipeline_mode"] = pl.Buffered(3)
    x_spec = pl.BlockSpec((block_b, D), lambda i: (i, 0), **x_spec_kwargs)

    # Weights/biases: full block, constant index_map -> fetched once.
    const = lambda a: pl.BlockSpec(a.shape, lambda i, _n=a.ndim: (0,) * _n)

    cost = pl.CostEstimate(
        flops=int(2 * b_pad * (D * h1d + h1d * h2d + h2d)
                  + 2 * b_pad * (h1d + h2d)),       # leaky-relu mul+max
        transcendentals=2 * b_pad,                   # sigmoid ~ exp + recip
        bytes_accessed=int(b_pad * D * x_bytes + b_pad * 4 + weight_bytes),
    )

    kernel = functools.partial(discriminator_kernel, use_mxu_tail=use_mxu_tail)

    out = pl.pallas_call(
        kernel,
        out_shape=jax.ShapeDtypeStruct((b_pad, 1), jnp.float32),
        grid=grid,
        in_specs=[x_spec,
                  const(w1), const(b1), const(w2), const(b2), const(w3), const(b3)],
        # Output write traffic is B*4 bytes (negligible vs the x stream); the
        # lane-dense relayout is a measure-first change and is not committed.
        out_specs=pl.BlockSpec((block_b, 1), lambda i: (i, 0)),
        compiler_params=pltpu.CompilerParams(
            dimension_semantics=("parallel",),
            vmem_limit_bytes=vmem_limit,
        ),
        cost_estimate=cost,
    )(x, w1, b1, w2, b2, w3, b3)
    return out[:B]


def init_params(key, input_dim):
    """Deterministic params. PyTorch Linear: W, b ~ U(-k, k), k = 1/sqrt(in).
    Stored pre-transposed as (in, out)."""
    dims = [(input_dim, 128), (128, 64), (64, 1)]
    params = {}
    for i, (fin, fout) in enumerate(dims, start=1):
        key, kw, kb = jax.random.split(key, 3)
        bound = 1.0 / jnp.sqrt(jnp.float32(fin))
        params[f"w{i}"] = jax.random.uniform(
            kw, (fin, fout), jnp.float32, minval=-bound, maxval=bound)
        params[f"b{i}"] = jax.random.uniform(
            kb, (1, fout), jnp.float32, minval=-bound, maxval=bound)
    return params


def discriminator_ref(x, params):
    """Pure-JAX f32 reference matching the PyTorch module."""
    x = x.astype(jnp.float32)
    h = x @ params["w1"] + params["b1"]
    h = jnp.where(h > 0, h, 0.2 * h)
    h = h @ params["w2"] + params["b2"]
    h = jnp.where(h > 0, h, 0.2 * h)
    h = h @ params["w3"] + params["b3"]
    return jax.nn.sigmoid(h)


if __name__ == "__main__":
    key = jax.random.PRNGKey(0)
    k_params, k_x1, k_x2, k_x3 = jax.random.split(key, 4)

    input_dim = 32
    params = init_params(k_params, input_dim)
    # bf16 MXU path vs f32 reference -> loose-but-safe tolerance (sigmoid
    # output in [0,1], slope <= 0.25 bounds error propagation).
    TOL = dict(atol=3e-2, rtol=3e-2)

    # Test 1: small batch, f32 x, default (budget-derived) tile -> single step.
    batch = 8
    x = jax.random.normal(k_x1, (batch, input_dim), jnp.float32)
    out = jax.block_until_ready(discriminator_forward(x, params))
    ref = discriminator_ref(x, params)
    assert out.shape == (batch, 1), out.shape
    assert bool(jnp.isfinite(out).all())
    assert jnp.allclose(out, ref, **TOL), (out, ref)

    # Test 2: bf16 x (halved HBM stream), explicit small tile -> multi-step
    # grid + batch-padding path.
    batch2 = 40
    x2 = jax.random.normal(k_x2, (batch2, input_dim), jnp.float32)
    out2 = jax.block_until_ready(
        discriminator_forward(x2.astype(jnp.bfloat16), params, block_b=16))
    ref2 = discriminator_ref(x2, params)
    assert out2.shape == (batch2, 1), out2.shape
    assert jnp.allclose(out2, ref2, **TOL), (out2, ref2)

    # Test 3: default tile logic with B large enough to trigger the >=2-step
    # (megacore) cap.
    batch3 = 40
    x3 = jax.random.normal(k_x3, (batch3, input_dim), jnp.float32)
    out3 = jax.block_until_ready(discriminator_forward(x3, params))
    ref3 = discriminator_ref(x3, params)
    assert out3.shape == (batch3, 1), out3.shape
    assert jnp.allclose(out3, ref3, **TOL), (out3, ref3)

    print("KERNEL_OK")
</pallas_src>

<mosaic_0001>
module attributes {stable_mosaic.version = 11 : i64} {
  func.func @discriminator_kernel(%arg0: i32, %arg1: memref<16x32xf32, #tpu.memory_space<vmem>>, %arg2: memref<32x128xbf16, #tpu.memory_space<vmem>>, %arg3: memref<1x128xf32, #tpu.memory_space<vmem>>, %arg4: memref<128x64xbf16, #tpu.memory_space<vmem>>, %arg5: memref<1x64xf32, #tpu.memory_space<vmem>>, %arg6: memref<64x1xbf16, #tpu.memory_space<vmem>>, %arg7: memref<1x1xf32, #tpu.memory_space<vmem>>, %arg8: memref<16x1xf32, #tpu.memory_space<vmem>>) attributes {dimension_semantics = [#tpu.dimension_semantics<parallel>], iteration_bounds = array<i64: 1>, scalar_prefetch = 0 : i64, scratch_operands = 0 : i64, tpu.core_type = #tpu.core_type<tc>, window_params = [{transform_indices = @transform_0, window_bounds = array<i64: 16, 32>}, {pipeline_mode = #tpu.pipeline_mode<synchronous>, transform_indices = @transform_1, window_bounds = array<i64: 32, 128>}, {pipeline_mode = #tpu.pipeline_mode<synchronous>, transform_indices = @transform_2, window_bounds = array<i64: 1, 128>}, {pipeline_mode = #tpu.pipeline_mode<synchronous>, transform_indices = @transform_3, window_bounds = array<i64: 128, 64>}, {pipeline_mode = #tpu.pipeline_mode<synchronous>, transform_indices = @transform_4, window_bounds = array<i64: 1, 64>}, {pipeline_mode = #tpu.pipeline_mode<synchronous>, transform_indices = @transform_5, window_bounds = array<i64: 64, 1>}, {pipeline_mode = #tpu.pipeline_mode<synchronous>, transform_indices = @transform_6, window_bounds = array<i64: 1, 1>}, {transform_indices = @transform_7, window_bounds = array<i64: 16, 1>}]} {
    %c0 = arith.constant 0 : index
    %c0_0 = arith.constant 0 : index
    %0 = vector.load %arg1[%c0, %c0_0] : memref<16x32xf32, #tpu.memory_space<vmem>>, vector<16x32xf32>
    %1 = arith.truncf %0 : vector<16x32xf32> to vector<16x32xbf16>
    %c0_1 = arith.constant 0 : index
    %c0_2 = arith.constant 0 : index
    %2 = vector.load %arg2[%c0_1, %c0_2] : memref<32x128xbf16, #tpu.memory_space<vmem>>, vector<32x128xbf16>
    %cst = arith.constant dense<0.000000e+00> : vector<16x128xf32>
    %3 = tpu.matmul %1, %2, %cst {dimension_numbers = #tpu.dot_dimension_numbers<[1], [0], [0], [1], [0, 0, 1, 1], [], []>} : vector<16x32xbf16>, vector<32x128xbf16>, vector<16x128xf32> -> vector<16x128xf32>
    %c0_3 = arith.constant 0 : index
    %c0_4 = arith.constant 0 : index
    %4 = vector.load %arg3[%c0_3, %c0_4] : memref<1x128xf32, #tpu.memory_space<vmem>>, vector<1x128xf32>
    %5 = vector.broadcast %4 : vector<1x128xf32> to vector<16x128xf32>
    %6 = arith.addf %3, %5 : vector<16x128xf32>
    %cst_5 = arith.constant 2.000000e-01 : f32
    %7 = vector.broadcast %cst_5 : f32 to vector<16x128xf32>
    %8 = arith.mulf %7, %6 : vector<16x128xf32>
    %9 = arith.maximumf %6, %8 : vector<16x128xf32>
    %10 = arith.truncf %9 : vector<16x128xf32> to vector<16x128xbf16>
    %c0_6 = arith.constant 0 : index
    %c0_7 = arith.constant 0 : index
    %11 = vector.load %arg4[%c0_6, %c0_7] : memref<128x64xbf16, #tpu.memory_space<vmem>>, vector<128x64xbf16>
    %cst_8 = arith.constant dense<0.000000e+00> : vector<16x64xf32>
    %12 = tpu.matmul %10, %11, %cst_8 {dimension_numbers = #tpu.dot_dimension_numbers<[1], [0], [0], [1], [0, 0, 1, 1], [], []>} : vector<16x128xbf16>, vector<128x64xbf16>, vector<16x64xf32> -> vector<16x64xf32>
    %c0_9 = arith.constant 0 : index
    %c0_10 = arith.constant 0 : index
    %13 = vector.load %arg5[%c0_9, %c0_10] : memref<1x64xf32, #tpu.memory_space<vmem>>, vector<1x64xf32>
    %14 = vector.broadcast %13 : vector<1x64xf32> to vector<16x64xf32>
    %15 = arith.addf %12, %14 : vector<16x64xf32>
    %cst_11 = arith.constant 2.000000e-01 : f32
    %16 = vector.broadcast %cst_11 : f32 to vector<16x64xf32>
    %17 = arith.mulf %16, %15 : vector<16x64xf32>
    %18 = arith.maximumf %15, %17 : vector<16x64xf32>
    %19 = arith.truncf %18 : vector<16x64xf32> to vector<16x64xbf16>
    %c0_12 = arith.constant 0 : index
    %c0_13 = arith.constant 0 : index
    %20 = vector.load %arg6[%c0_12, %c0_13] : memref<64x1xbf16, #tpu.memory_space<vmem>>, vector<64x1xbf16>
    %cst_14 = arith.constant dense<0.000000e+00> : vector<16x1xf32>
    %21 = tpu.matmul %19, %20, %cst_14 {dimension_numbers = #tpu.dot_dimension_numbers<[1], [0], [0], [1], [0, 0, 1, 1], [], []>} : vector<16x64xbf16>, vector<64x1xbf16>, vector<16x1xf32> -> vector<16x1xf32>
    %c0_15 = arith.constant 0 : index
    %c0_16 = arith.constant 0 : index
    %22 = vector.load %arg7[%c0_15, %c0_16] : memref<1x1xf32, #tpu.memory_space<vmem>>, vector<1x1xf32>
    %23 = vector.broadcast %22 : vector<1x1xf32> to vector<16x1xf32>
    %24 = arith.addf %21, %23 : vector<16x1xf32>
    %25 = arith.negf %24 : vector<16x1xf32>
    %26 = math.exp %25 : vector<16x1xf32>
    %cst_17 = arith.constant 1.000000e+00 : f32
    %27 = vector.broadcast %cst_17 : f32 to vector<16x1xf32>
    %28 = arith.addf %27, %26 : vector<16x1xf32>
    %29 = arith.divf %27, %28 : vector<16x1xf32>
    %c0_18 = arith.constant 0 : index
    %c0_19 = arith.constant 0 : index
    %30 = vector.load %arg8[%c0_18, %c0_19] : memref<16x1xf32, #tpu.memory_space<vmem>>, vector<16x1xf32>
    tpu.vector_store %arg8[%c0_18, %c0_19], %29 {strides = array<i32>} : memref<16x1xf32, #tpu.memory_space<vmem>>, vector<16x1xf32>,
    return
  }
  func.func @transform_0(%arg0: i32) -> (i32, i32) {
    %c0_i32 = arith.constant 0 : i32
    %c0_i32_0 = arith.constant 0 : i32
    return %arg0, %c0_i32 : i32, i32
  }
  func.func @transform_1(%arg0: i32) -> (i32, i32) {
    %c0_i32 = arith.constant 0 : i32
    %c0_i32_0 = arith.constant 0 : i32
    %c0_i32_1 = arith.constant 0 : i32
    return %c0_i32, %c0_i32_0 : i32, i32
  }
  func.func @transform_2(%arg0: i32) -> (i32, i32) {
    %c0_i32 = arith.constant 0 : i32
    %c0_i32_0 = arith.constant 0 : i32
    %c0_i32_1 = arith.constant 0 : i32
    return %c0_i32, %c0_i32_0 : i32, i32
  }
  func.func @transform_3(%arg0: i32) -> (i32, i32) {
    %c0_i32 = arith.constant 0 : i32
    %c0_i32_0 = arith.constant 0 : i32
    %c0_i32_1 = arith.constant 0 : i32
    return %c0_i32, %c0_i32_0 : i32, i32
  }
  func.func @transform_4(%arg0: i32) -> (i32, i32) {
    %c0_i32 = arith.constant 0 : i32
    %c0_i32_0 = arith.constant 0 : i32
    %c0_i32_1 = arith.constant 0 : i32
    return %c0_i32, %c0_i32_0 : i32, i32
  }
  func.func @transform_5(%arg0: i32) -> (i32, i32) {
    %c0_i32 = arith.constant 0 : i32
    %c0_i32_0 = arith.constant 0 : i32
    %c0_i32_1 = arith.constant 0 : i32
    return %c0_i32, %c0_i32_0 : i32, i32
  }
  func.func @transform_6(%arg0: i32) -> (i32, i32) {
    %c0_i32 = arith.constant 0 : i32
    %c0_i32_0 = arith.constant 0 : i32
    %c0_i32_1 = arith.constant 0 : i32
    return %c0_i32, %c0_i32_0 : i32, i32
  }
  func.func @transform_7(%arg0: i32) -> (i32, i32) {
    %c0_i32 = arith.constant 0 : i32
    %c0_i32_0 = arith.constant 0 : i32
    return %arg0, %c0_i32 : i32, i32
  }
}

</mosaic_0001>

<llo_original>
// kernel: tpu_custom_call.1
$region0: #{tpu_custom_call.1}
  #allocation0 [shape = 'u32[]', space=smem, size = 0x4, offset = 0x4, fixed_abs, tag = 'smem constant byte address 0x4 - core index']
  #allocation1 [shape = 'u32[72,128]{1,0:T(1,128)}', space=vmem, size = 0x9000, scoped, tag = 'internal scratch']
  #allocation2 [shape = 'f32[1,1]{1,0:T(1,128)S(1)}', space=vmem, size = 0x200, scoped, tag = 'scoped memory for tpu_custom_call.1']
  %s0 = inlined_call_operand.vmem [shape: f32[16,32], index: 0, kind: input, shape index: {}]
  %s1 = inlined_call_operand.vmem [shape: bf16[32,128], index: 1, kind: input, shape index: {}]
  %s2 = inlined_call_operand.vmem [shape: f32[1,128], index: 2, kind: input, shape index: {}]
  %s3 = inlined_call_operand.vmem [shape: bf16[128,64], index: 3, kind: input, shape index: {}]
  %s4 = inlined_call_operand.vmem [shape: f32[1,64], index: 4, kind: input, shape index: {}]
  %s5 = inlined_call_operand.vmem [shape: bf16[64,1], index: 5, kind: input, shape index: {}]
  %s6 = inlined_call_operand.<no memory space> [shape: f32[1,1], index: 6, kind: input, shape index: {}]
  %s7 = inlined_call_operand.vmem [shape: f32[16,1], index: 7, kind: output, shape index: {}]
  %s8 = sld [smem:[#allocation0]]
  $region38: #{tpu_custom_call.1} parent=0
    _
  %s10 = ssub.s32 1, %s8
  %s11 = scalar_select 0, %s10, %s8
  %v12 = vstv %s6
  %13 = vst [vmem:[#allocation2] sm:$0x1] %v12
  // Predicated region
  $region2: #{tpu_custom_call.1} parent=0 // pred_check
    _
  $region3: #{tpu_custom_call.1} parent=0 // pred_check_branch
    %15 = sbr.rel (0) target = $region5
  $region4: #{tpu_custom_call.1} parent=0 // pred_region
    _
  $region5: #{tpu_custom_call.1} parent=0 // pred_fallthru
    _
  // Predicated region
  $region6: #{tpu_custom_call.1} parent=0 // pred_check
    _
  $region7: #{tpu_custom_call.1} parent=0 // pred_check_branch
    %17 = sbr.rel (0) target = $region9
  $region8: #{tpu_custom_call.1} parent=0 // pred_region
    _
  $region9: #{tpu_custom_call.1} parent=0 // pred_fallthru
    _
  // Predicated region
  $region10: #{tpu_custom_call.1} parent=0 // pred_check
    _
  $region11: #{tpu_custom_call.1} parent=0 // pred_check_branch
    %19 = sbr.rel (0) target = $region13
  $region12: #{tpu_custom_call.1} parent=0 // pred_region
    _
  $region13: #{tpu_custom_call.1} parent=0 // pred_fallthru
    _
  // Predicated region
  $region14: #{tpu_custom_call.1} parent=0 // pred_check
    _
  $region15: #{tpu_custom_call.1} parent=0 // pred_check_branch
    %21 = sbr.rel (0) target = $region17
  $region16: #{tpu_custom_call.1} parent=0 // pred_region
    _
  $region17: #{tpu_custom_call.1} parent=0 // pred_fallthru
    _
  // Predicated region
  $region18: #{tpu_custom_call.1} parent=0 // pred_check
    _
  $region19: #{tpu_custom_call.1} parent=0 // pred_check_branch
    %23 = sbr.rel (0) target = $region21
  $region20: #{tpu_custom_call.1} parent=0 // pred_region
    _
  $region21: #{tpu_custom_call.1} parent=0 // pred_fallthru
    _
  // Predicated region
  $region22: #{tpu_custom_call.1} parent=0 // pred_check
    _
  $region23: #{tpu_custom_call.1} parent=0 // pred_check_branch
    %25 = sbr.rel (0) target = $region25
  $region24: #{tpu_custom_call.1} parent=0 // pred_region
    _
  $region25: #{tpu_custom_call.1} parent=0 // pred_fallthru
    _
  // Predicated region
  $region26: #{tpu_custom_call.1} parent=0 // pred_check
    _
  $region27: #{tpu_custom_call.1} parent=0 // pred_check_branch
    %27 = sbr.rel (0) target = $region29
  $region28: #{tpu_custom_call.1} parent=0 // pred_region
    _
  $region29: #{tpu_custom_call.1} parent=0 // pred_fallthru
    _
  %v29 = vld [vmem:[%s0] sm:$0xff]
  %v30 = vld [vmem:[%s0 + $0x8] sm:$0xff]
  %v31 = vpack.c.bf16 %v30, %v29
  %v32 = vld [vmem:[%s1] sm:$0xf]
  %v33 = vld [vmem:[%s1 + $0x4] sm:$0xf]
  %v34 = vld [vmem:[%s1 + $0x8] sm:$0xf]
  %v35 = vld [vmem:[%s1 + $0xc] sm:$0xf]
  %v36 = vld [vmem:[%s2] sm:$0x1]
  %v38 = vperm.slane %v36, 0
  %v44 = vunpack.c.l.b16 %v32
  %v45 = vunpack.c.l.b16 %v33
  %v46 = vunpack.c.l.b16 %v34
  %v47 = vunpack.c.l.b16 %v35
  %v48 = vpack.c.b16 %v45, %v44
  %v49 = vpack.c.b16 %v47, %v46
  %vm52 = vcmask 261120
  %v54 = vsel %vm52, %v31, 0
  %56 = vmatpush.bf16.msra.mxu0 0
  %57 = vmatpush.bf16.msra.mxu0 0
  %58 = vmatpush.bf16.msra.mxu0 0
  %59 = vmatpush.bf16.msra.mxu0 0
  %60 = vmatpush.bf16.msra.mxu0 0
  %61 = vmatpush.bf16.msra.mxu0 0
  %62 = vmatpush.bf16.msra.mxu0 %v49
  %63 = vmatpush.bf16.msra.mxu0 %v48
  %64 = vmatmul.bf16.gmra.mxu0 %v54
  %v65 = vpop.f32.mrf.mxu0
  %v66 = vadd.f32 %v38, %v65
  %v67 = vpop.f32.mrf.mxu0
  %v68 = vadd.f32 %v38, %v67
  %69 = vdwg.mxu0
  %v70 = vmul.f32 %v66, 0.2
  %v71 = vmul.f32 %v68, 0.2
  %v72 = vmax.f32 %v66, %v70
  %v73 = vmax.f32 %v68, %v71
  %v74 = vpack.c.bf16 %v73, %v72
  %v75 = vld [vmem:[%s3] sm:$0xf]
  %v76 = vld [vmem:[%s3 + $0x4] sm:$0xf]
  %v77 = vld [vmem:[%s3 + $0x8] sm:$0xf]
  %v78 = vld [vmem:[%s3 + $0xc] sm:$0xf]
  %v79 = vld [vmem:[%s3 + $0x10] sm:$0xf]
  %v80 = vld [vmem:[%s3 + $0x14] sm:$0xf]
  %v81 = vld [vmem:[%s3 + $0x18] sm:$0xf]
  %v82 = vld [vmem:[%s3 + $0x1c] sm:$0xf]
  %v83 = vld [vmem:[%s3 + $0x20] sm:$0xf]
  %v84 = vld [vmem:[%s3 + $0x24] sm:$0xf]
  %v85 = vld [vmem:[%s3 + $0x28] sm:$0xf]
  %v86 = vld [vmem:[%s3 + $0x2c] sm:$0xf]
  %v87 = vld [vmem:[%s3 + $0x30] sm:$0xf]
  %v88 = vld [vmem:[%s3 + $0x34] sm:$0xf]
  %v89 = vld [vmem:[%s3 + $0x38] sm:$0xf]
  %v90 = vld [vmem:[%s3 + $0x3c] sm:$0xf]
  %v91 = vld [vmem:[%s4] sm:$0x1]
  %v93 = vperm.slane %v91, 0
  %v111 = vunpack.c.l.b16 %v75
  %v112 = vunpack.c.l.b16 %v76
  %v113 = vunpack.c.l.b16 %v77
  %v114 = vunpack.c.l.b16 %v78
  %v115 = vunpack.c.l.b16 %v79
  %v116 = vunpack.c.l.b16 %v80
  %v117 = vunpack.c.l.b16 %v81
  %v118 = vunpack.c.l.b16 %v82
  %v119 = vunpack.c.l.b16 %v83
  %v120 = vunpack.c.l.b16 %v84
  %v121 = vunpack.c.l.b16 %v85
  %v122 = vunpack.c.l.b16 %v86
  %v123 = vunpack.c.l.b16 %v87
  %v124 = vunpack.c.l.b16 %v88
  %v125 = vunpack.c.l.b16 %v89
  %v126 = vunpack.c.l.b16 %v90
  %v127 = vpack.c.b16 %v112, %v111
  %v128 = vpack.c.b16 %v114, %v113
  %v129 = vpack.c.b16 %v116, %v115
  %v130 = vpack.c.b16 %v118, %v117
  %v131 = vpack.c.b16 %v120, %v119
  %v132 = vpack.c.b16 %v122, %v121
  %v133 = vpack.c.b16 %v124, %v123
  %v134 = vpack.c.b16 %v126, %v125
  %143 = vmatpush.bf16.msra.mxu0 %v134
  %144 = vmatpush.bf16.msra.mxu0 %v133
  %145 = vmatpush.bf16.msra.mxu0 %v132
  %146 = vmatpush.bf16.msra.mxu0 %v131
  %147 = vmatpush.bf16.msra.mxu0 %v130
  %148 = vmatpush.bf16.msra.mxu0 %v129
  %149 = vmatpush.bf16.msra.mxu0 %v128
  %150 = vmatpush.bf16.msra.mxu0 %v127
  %151 = vmatmul.bf16.gmra.mxu0 %v74
  %v152 = vpop.f32.mrf.mxu0
  %v153 = vadd.f32 %v93, %v152
  %v154 = vpop.f32.mrf.mxu0
  %v155 = vadd.f32 %v93, %v154
  %156 = vdwg.mxu0
  %v157 = vmul.f32 %v153, 0.2
  %v158 = vmul.f32 %v155, 0.2
  %v159 = vmax.f32 %v153, %v157
  %v160 = vmax.f32 %v155, %v158
  %v161 = vpack.c.bf16 %v160, %v159
  %v162 = vld [vmem:[%s5] sm:$0xf]
  %v163 = vld [vmem:[%s5 + $0x4] sm:$0xf]
  %v164 = vld [vmem:[%s5 + $0x8] sm:$0xf]
  %v165 = vld [vmem:[%s5 + $0xc] sm:$0xf]
  %v166 = vld [vmem:[%s5 + $0x10] sm:$0xf]
  %v167 = vld [vmem:[%s5 + $0x14] sm:$0xf]
  %v168 = vld [vmem:[%s5 + $0x18] sm:$0xf]
  %v169 = vld [vmem:[%s5 + $0x1c] sm:$0xf]
  %v170 = vld [vmem:[#allocation2] sm:$0x1]
  %v172 = vperm.slane %v170, 0
  %v182 = vunpack.c.l.b16 %v162
  %v183 = vunpack.c.l.b16 %v163
  %v184 = vunpack.c.l.b16 %v164
  %v185 = vunpack.c.l.b16 %v165
  %v186 = vunpack.c.l.b16 %v166
  %v187 = vunpack.c.l.b16 %v167
  %v188 = vunpack.c.l.b16 %v168
  %v189 = vunpack.c.l.b16 %v169
  %v190 = vpack.c.b16 %v183, %v182
  %v191 = vpack.c.b16 %v185, %v184
  %v192 = vpack.c.b16 %v187, %v186
  %v193 = vpack.c.b16 %v189, %v188
  %vm198 = vcmask 523264
  %v200 = vsel %vm198, %v161, 0
  %202 = vmatpush.bf16.msra.mxu0 0
  %203 = vmatpush.bf16.msra.mxu0 0
  %204 = vmatpush.bf16.msra.mxu0 0
  %205 = vmatpush.bf16.msra.mxu0 0
  %206 = vmatpush.bf16.msra.mxu0 %v193
  %207 = vmatpush.bf16.msra.mxu0 %v192
  %208 = vmatpush.bf16.msra.mxu0 %v191
  %209 = vmatpush.bf16.msra.mxu0 %v190
  %210 = vmatmul.bf16.gmra.mxu0 %v200
  %v211 = vpop.f32.mrf.mxu0
  %v212 = vadd.f32 %v172, %v211
  %v213 = vpop.f32.mrf.mxu0
  %v214 = vadd.f32 %v172, %v213
  %215 = vdwg.mxu0
  %v216 = vxor.u32 %v212, 2147483648
  %v217 = vxor.u32 %v214, 2147483648
  %v218 = vmul.f32 %v216, 1.442695
  %v219 = vpow.pop %v218
  %v220 = vmul.f32 %v217, 1.442695
  %v221 = vpow.pop %v220
  %v222 = vadd.f32 %v219, 1.0
  %v223 = vadd.f32 %v221, 1.0
  %v224 = vrcp.pop %v222
  %v225 = vmul.f32 %v222, %v224
  %v226 = vsub.f32 1.0, %v225
  %v227 = vmul.f32 %v224, %v226
  %v228 = vadd.f32 %v224, %v227
  %vm229 = vweird.f32 %v222
  %vm230 = vweird.f32 %v224
  %vm231 = vmor %vm229, %vm230
  %v232 = vsel %vm231, %v224, %v228
  %v233 = vand.u32 2147483647, %v222
  %vm234 = vcmp.eq.f32.partialorder %v233, 8.507059e+37
  %v235 = vand.u32 %v222, 2147483648
  %v236 = vor.u32 1.1754944e-38, %v235
  %v237 = vsel %vm234, %v236, %v232
  %v238 = vmul.f32 1.0, %v237
  %v239 = vrcp.pop %v223
  %v240 = vmul.f32 %v223, %v239
  %v241 = vsub.f32 1.0, %v240
  %v242 = vmul.f32 %v239, %v241
  %v243 = vadd.f32 %v239, %v242
  %vm244 = vweird.f32 %v223
  %vm245 = vweird.f32 %v239
  %vm246 = vmor %vm244, %vm245
  %v247 = vsel %vm246, %v239, %v243
  %v248 = vand.u32 2147483647, %v223
  %vm249 = vcmp.eq.f32.partialorder %v248, 8.507059e+37
  %v250 = vand.u32 %v223, 2147483648
  %v251 = vor.u32 1.1754944e-38, %v250
  %v252 = vsel %vm249, %v251, %v247
  %v253 = vmul.f32 1.0, %v252
  %vm254 = vcmask 7168
  %255 = vst.msk [vmem:[%s7] sm:$0xff] %vm254, %v238
  %256 = vst.msk [vmem:[%s7 + $0x8] sm:$0xff] %vm254, %v253
  // Predicated region
  $region30: #{tpu_custom_call.1} parent=0 // pred_check
    _
  $region31: #{tpu_custom_call.1} parent=0 // pred_check_branch
    %258 = sbr.rel (0) target = $region33
  $region32: #{tpu_custom_call.1} parent=0 // pred_region
    _
  $region33: #{tpu_custom_call.1} parent=0 // pred_fallthru
    _
  // Predicated region
  $region34: #{tpu_custom_call.1} parent=0 // pred_check
    _
  $region35: #{tpu_custom_call.1} parent=0 // pred_check_branch
    %260 = sbr.rel (0) target = $region37
  $region36: #{tpu_custom_call.1} parent=0 // pred_region
    _
  $region37: #{tpu_custom_call.1} parent=0 // pred_fallthru
    _

</llo_original>
